<compile_context>
chip_gen: v6e
topology: v6e:2x2x1
jax: 0.10.0
libtpu: 0.0.40
codegen_flags: <defaults>
</compile_context>

<pallas_src>
import functools

import jax
import jax.numpy as jnp
from jax.experimental import pallas as pl
from jax.experimental.pallas import tpu as pltpu


def _round_up(x, m):
    return (x + m - 1) // m * m


@functools.lru_cache(maxsize=None)
def _vmem_limit_bytes():
    """Generation-dependent VMEM budget (loose on 128 MiB v5e/v6e, tight on v7x)."""
    cap = 64 * 1024 * 1024
    try:
        cap = getattr(pltpu.get_tpu_info(), "vmem_capacity_bytes", cap)
    except Exception:
        pass
    if cap >= 96 * 1024 * 1024:
        return 100 * 1024 * 1024      # v5e / v6e: 128 MiB physical VMEM
    return 40 * 1024 * 1024           # v7x: 64 MiB physical VMEM per TC


# f32 budget for the (Mh, Cout) matmul product / accumulator value: sets the
# M-tile so mb is 1k (Cout=512) ... 8k (Cout=64) rows, i.e. mb >> halo.
_ACC_BUDGET_BYTES = 2 * 1024 * 1024


# ----------------------------------------------------------------------------
# Pallas kernels
# ----------------------------------------------------------------------------
def _conv3x3_kernel(xh_ref, w_ref, b_ref, o_ref, *, wp):
    """3x3 conv + bias + ReLU on one (Mb, Cout) tile, dx taps folded into K.

    xh_ref : (1, Mh, Cin)      bf16  halo'd slab of the flattened padded input
    w_ref  : (3, 3*Cin, Cout)  bf16  weights, [dy, dx*Cin + c, o]; VMEM-resident
    b_ref  : (1, Cout)         f32
    o_ref  : (Mb, Cout)        bf16  conv output rows (flat padded space)
    wp     : padded row width (W + 2); tap (dy, dx) is flat shift dy*wp + dx
    """
    mh = xh_ref.shape[1]
    mb = o_ref.shape[0]
    x0 = xh_ref[0]                                    # (Mh, Cin) bf16
    # dx taps folded into the contraction: roll the bf16 slab (cheap, XLU) and
    # concat along K -> one K=3*Cin matmul per dy instead of three K=Cin ones.
    x1 = pltpu.roll(x0, mh - 1, axis=0)               # x1[i] = x0[i + 1]
    x2 = pltpu.roll(x0, mh - 2, axis=0)               # x2[i] = x0[i + 2]
    xcat = jnp.concatenate([x0, x1, x2], axis=-1)     # (Mh, 3*Cin)

    acc = None
    for dy in range(3):
        p = jnp.dot(xcat, w_ref[dy], preferred_element_type=jnp.float32)
        s = dy * wp
        if s:
            # Align tap row dy: output row i needs input row i + dy*wp.  The
            # wrap-around garbage lands in rows >= mb (halo) and is discarded.
            p = pltpu.roll(p, mh - s, axis=0)
        part = p[:mb]
        acc = part if acc is None else acc + part     # SSA accumulate (no RMW)
    o_ref[...] = jnp.maximum(acc + b_ref[...], 0.0).astype(o_ref.dtype)


def _gemm_bias_relu_kernel(x_ref, w_ref, b_ref, o_ref):
    """out = relu(x @ w + b) on one (Mb, Cout) tile (conv1_1 im2col GEMM)."""
    acc = jnp.dot(x_ref[...], w_ref[...], preferred_element_type=jnp.float32)
    o_ref[...] = jnp.maximum(acc + b_ref[...], 0.0).astype(o_ref.dtype)


def _maxpool_kernel(x_ref, o_ref):
    """Full 2x2 / stride-2 max pool on a lane-dense block.

    x_ref : (1, 2*hob, W/2, 2C) bf16  (column pairs merged into the lane dim)
    o_ref : (1, hob,   W/2,  C) bf16
    """
    c = o_ref.shape[3]
    hob, wo, c2 = x_ref.shape[1] // 2, x_ref.shape[2], x_ref.shape[3]
    x = x_ref[0].reshape(hob, 2, wo, c2)              # leading-dim split only
    v = jnp.max(x, axis=1)                            # row-pair max
    # Column-pair max = max of the two C-wide lane groups.
    o_ref[0] = jnp.maximum(v[..., :c], v[..., c:]).astype(o_ref.dtype)


# ----------------------------------------------------------------------------
# Wrappers (layout plumbing + pallas_call)
# ----------------------------------------------------------------------------
def _conv_tiles(m_out, cout, halo):
    """Pick (mb, num_m, m_pad) from the f32 product budget."""
    mb = max(8, (_ACC_BUDGET_BYTES // (4 * cout)) // 8 * 8)
    mb = min(mb, _round_up(m_out, 8))
    if mb >= m_out:
        # Keep >= 2 M blocks for the v7x megacore when halving the tile does
        # not reintroduce halo waste.
        half = _round_up(-(-m_out // 2), 8)
        if half >= max(4 * halo, 512):
            mb = half
    num_m = -(-m_out // mb)
    return mb, num_m, num_m * mb


def conv3x3_relu(x_nhwc, w_oihw, b):
    """3x3 conv, pad=1, stride=1, + ReLU.  x: (N,H,W,Cin), w: (Cout,Cin,3,3)."""
    n, h, w_sp, cin = x_nhwc.shape
    cout = w_oihw.shape[0]

    x = x_nhwc.astype(jnp.bfloat16)
    w_hwio = jnp.transpose(w_oihw, (2, 3, 1, 0)).astype(jnp.bfloat16)  # HWIO
    b2 = b.reshape(1, cout).astype(jnp.float32)
    params = pltpu.CompilerParams(dimension_semantics=("parallel",),
                                  vmem_limit_bytes=_vmem_limit_bytes())
    xp = jnp.pad(x, ((0, 0), (1, 1), (1, 1), (0, 0)))

    if cin <= 4:
        # conv1_1: fold the 3x3xCin taps into one K = 9*Cin GEMM (cheap
        # wrapper-side im2col) instead of lane-padding a Cin=3 contraction.
        cols = jnp.concatenate(
            [xp[:, dy:dy + h, dx:dx + w_sp, :]
             for dy in range(3) for dx in range(3)], axis=-1)     # (N,H,W,9C)
        k = 9 * cin
        m_out = n * h * w_sp
        xflat = cols.reshape(m_out, k)
        mb, num_m, m_pad = _conv_tiles(m_out, cout, halo=0)
        xflat = jnp.pad(xflat, ((0, m_pad - m_out), (0, 0)))
        out2d = pl.pallas_call(
            _gemm_bias_relu_kernel,
            out_shape=jax.ShapeDtypeStruct((m_pad, cout), jnp.bfloat16),
            grid=(num_m,),
            in_specs=[
                pl.BlockSpec((mb, k), lambda m: (m, 0)),
                pl.BlockSpec((k, cout), lambda m: (0, 0)),
                pl.BlockSpec((1, cout), lambda m: (0, 0)),
            ],
            out_specs=pl.BlockSpec((mb, cout), lambda m: (m, 0)),
            compiler_params=params,
        )(xflat, w_hwio.reshape(k, cout), b2)
        return out2d[:m_out].reshape(n, h, w_sp, cout)

    # General path: flatten batch + padded spatial rows into one M axis and run
    # the whole layer as 3 large GEMMs (dx folded into K) per M tile.
    hp, wp = h + 2, w_sp + 2
    m_out = n * hp * wp
    xflat = xp.reshape(m_out, cin)
    halo = _round_up(2 * wp + 2, 8)            # max tap shift, sublane-rounded
    mb, num_m, m_pad = _conv_tiles(m_out, cout, halo)
    mh = mb + halo

    # Per-block halo'd windows so BlockSpec windows never overlap.  With the
    # large mb the duplication factor is only ~1.05-1.2x.
    # TODO(synk): replace with memory_space=pl.ANY + overlapping-window
    # make_async_copy to drop this extra HBM pass entirely.
    xflat = jnp.pad(xflat, ((0, m_pad + halo - m_out), (0, 0)))
    win = (jnp.arange(num_m, dtype=jnp.int32)[:, None] * mb
           + jnp.arange(mh, dtype=jnp.int32)[None, :])
    xh = jnp.take(xflat, win, axis=0)                            # (num_m,Mh,Cin)
    w_k = w_hwio.reshape(3, 3 * cin, cout)                       # [dy, dx*Cin+c, o]

    # Weight / bias index maps are constant along M -> fetched once, resident.
    # TODO(synk): single-buffer them (pipeline_mode=pl.Buffered(1)) to save the
    # second 2-5 MiB weight buffer on the 512-channel layers (v7x VMEM).
    out2d = pl.pallas_call(
        functools.partial(_conv3x3_kernel, wp=wp),
        out_shape=jax.ShapeDtypeStruct((m_pad, cout), jnp.bfloat16),
        grid=(num_m,),
        in_specs=[
            pl.BlockSpec((1, mh, cin), lambda m: (m, 0, 0)),
            pl.BlockSpec((3, 3 * cin, cout), lambda m: (0, 0, 0)),
            pl.BlockSpec((1, cout), lambda m: (0, 0)),
        ],
        out_specs=pl.BlockSpec((mb, cout), lambda m: (m, 0)),
        compiler_params=params,
    )(xh, w_k, b2)
    # Valid conv outputs live in the top-left HxW corner of the padded grid.
    return out2d[:m_out].reshape(n, hp, wp, cout)[:, :h, :w_sp, :]


def maxpool2x2(x_nhwc):
    """2x2 / stride-2 max pool (matches nn.MaxPool2d(2)), NHWC bf16."""
    n, h, w, c = x_nhwc.shape
    if h % 2 or w % 2:                        # MaxPool2d(2) floors odd dims
        x_nhwc = x_nhwc[:, :h // 2 * 2, :w // 2 * 2, :]
        h, w = h // 2 * 2, w // 2 * 2
    ho, wo = h // 2, w // 2
    # Column pairs merged into the lane dim (free reshape): the column max is a
    # lane-group max in-kernel, and the input block is lane-dense (2C >= 128).
    x2 = x_nhwc.reshape(n, h, wo, 2 * c)

    hob = ho                                  # row-tile: ~2 MiB input blocks
    while hob % 2 == 0 and (2 * hob) * wo * (2 * c) * 2 > 2 * 1024 * 1024:
        hob //= 2
    num_hb = ho // hob

    return pl.pallas_call(
        _maxpool_kernel,
        out_shape=jax.ShapeDtypeStruct((n, ho, wo, c), x_nhwc.dtype),
        grid=(n, num_hb),
        in_specs=[pl.BlockSpec((1, 2 * hob, wo, 2 * c),
                               lambda i, r: (i, r, 0, 0))],
        out_specs=pl.BlockSpec((1, hob, wo, c), lambda i, r: (i, r, 0, 0)),
        compiler_params=pltpu.CompilerParams(
            dimension_semantics=("parallel", "parallel"),
            vmem_limit_bytes=_vmem_limit_bytes()),
    )(x2)


# ----------------------------------------------------------------------------
# VGG19 feature extractor (slices r11, r21, r31, r41, r51)
# ----------------------------------------------------------------------------
# torchvision vgg19.features layout (every conv is followed by ReLU):
#   slice1 = [:2]   : conv1_1
#   slice2 = [2:7]  : conv1_2, pool, conv2_1
#   slice3 = [7:12] : conv2_2, pool, conv3_1
#   slice4 = [12:21]: conv3_2, conv3_3, conv3_4, pool, conv4_1
#   slice5 = [21:30]: conv4_2, conv4_3, conv4_4, pool, conv5_1
_VGG19_SLICE_CFG = [
    [("conv", 3, 64)],
    [("conv", 64, 64), ("pool",), ("conv", 64, 128)],
    [("conv", 128, 128), ("pool",), ("conv", 128, 256)],
    [("conv", 256, 256), ("conv", 256, 256), ("conv", 256, 256),
     ("pool",), ("conv", 256, 512)],
    [("conv", 512, 512), ("conv", 512, 512), ("conv", 512, 512),
     ("pool",), ("conv", 512, 512)],
]


class VGG19Feature:
    """Pallas re-implementation of VGG19_feature.forward (synthetic weights)."""

    def __init__(self, key, vgg_normal_correct=True):
        self.vgg_normal_correct = vgg_normal_correct
        # TODO(synk): pretrained torchvision weights cannot be loaded here;
        # parameters are deterministic He-initialized synthetic stand-ins.
        self.slices = []
        for slice_cfg in _VGG19_SLICE_CFG:
            ops = []
            for op in slice_cfg:
                if op[0] == "conv":
                    _, cin, cout = op
                    key, kw, kb = jax.random.split(key, 3)
                    std = (2.0 / (cin * 9)) ** 0.5
                    w = std * jax.random.normal(kw, (cout, cin, 3, 3),
                                                dtype=jnp.float32)
                    bb = 0.01 * jax.random.normal(kb, (cout,),
                                                  dtype=jnp.float32)
                    ops.append(("conv", w, bb))
                else:
                    ops.append(("pool",))
            self.slices.append(ops)
        self.mean = jnp.array([0.485, 0.456, 0.406],
                              dtype=jnp.float32).reshape(1, 3, 1, 1)
        self.std = jnp.array([0.229, 0.224, 0.225],
                             dtype=jnp.float32).reshape(1, 3, 1, 1)

    def __call__(self, x_nchw, layers=None, preprocess=False):
        x = x_nchw.astype(jnp.float32)
        if preprocess:                       # same elementwise glue as PyTorch
            x = (x + 1.0) / 2.0
            x = (x - self.mean) / self.std
        # NCHW (PyTorch) -> NHWC; bf16 activations end-to-end (f32 accumulate
        # in-kernel); returned features are cast back to f32 NCHW.
        # TODO(synk): bf16 activations diverge slightly from the f32 PyTorch
        # reference; keep conv1_x in f32 if the perceptual-loss tolerance needs it.
        x = jnp.transpose(x, (0, 2, 3, 1)).astype(jnp.bfloat16)
        features = []
        for ops in self.slices:
            for op in ops:
                if op[0] == "conv":
                    _, w, bb = op
                    x = conv3x3_relu(x, w, bb)
                else:
                    x = maxpool2x2(x)
            features.append(
                jnp.transpose(x, (0, 3, 1, 2)).astype(jnp.float32))
        if layers:
            layer_idx = {"r11": 0, "r21": 1, "r31": 2, "r41": 3, "r51": 4}
            return [features[layer_idx[l]] for l in layers]
        return features


if __name__ == "__main__":
    key = jax.random.PRNGKey(0)
    k_model, k_x = jax.random.split(key)

    model = VGG19Feature(k_model, vgg_normal_correct=True)

    # Small image batch consistent with the module: NCHW, 3 input channels.
    x = jax.random.uniform(k_x, (2, 3, 16, 16), dtype=jnp.float32)

    feats = model(x)                       # default path: all 5 features
    feats = jax.block_until_ready(feats)

    expected = [(2, 64, 16, 16), (2, 128, 8, 8), (2, 256, 4, 4),
                (2, 512, 2, 2), (2, 512, 1, 1)]
    assert [tuple(f.shape) for f in feats] == expected, \
        [tuple(f.shape) for f in feats]
    assert all(bool(jnp.isfinite(f).all()) for f in feats)

    # Also exercise the layer-selection + preprocess path.
    sel = model(x, layers=["r11", "r41"], preprocess=True)
    sel = jax.block_until_ready(sel)
    assert tuple(sel[0].shape) == (2, 64, 16, 16)
    assert tuple(sel[1].shape) == (2, 512, 2, 2)

    print("KERNEL_OK")
</pallas_src>

<mosaic_0001>
module attributes {stable_mosaic.version = 11 : i64} {
  func.func @_gemm_bias_relu_kernel(%arg0: i32, %arg1: memref<512x27xbf16, #tpu.memory_space<vmem>>, %arg2: memref<27x64xbf16, #tpu.memory_space<vmem>>, %arg3: memref<1x64xf32, #tpu.memory_space<vmem>>, %arg4: memref<512x64xbf16, #tpu.memory_space<vmem>>) attributes {dimension_semantics = [#tpu.dimension_semantics<parallel>], iteration_bounds = array<i64: 1>, scalar_prefetch = 0 : i64, scratch_operands = 0 : i64, tpu.core_type = #tpu.core_type<tc>, window_params = [{transform_indices = @transform_0, window_bounds = array<i64: 512, 27>}, {pipeline_mode = #tpu.pipeline_mode<synchronous>, transform_indices = @transform_1, window_bounds = array<i64: 27, 64>}, {pipeline_mode = #tpu.pipeline_mode<synchronous>, transform_indices = @transform_2, window_bounds = array<i64: 1, 64>}, {transform_indices = @transform_3, window_bounds = array<i64: 512, 64>}]} {
    %c0 = arith.constant 0 : index
    %c0_0 = arith.constant 0 : index
    %0 = vector.load %arg1[%c0, %c0_0] : memref<512x27xbf16, #tpu.memory_space<vmem>>, vector<512x27xbf16>
    %c0_1 = arith.constant 0 : index
    %c0_2 = arith.constant 0 : index
    %1 = vector.load %arg2[%c0_1, %c0_2] : memref<27x64xbf16, #tpu.memory_space<vmem>>, vector<27x64xbf16>
    %cst = arith.constant dense<0.000000e+00> : vector<512x64xf32>
    %2 = tpu.matmul %0, %1, %cst {dimension_numbers = #tpu.dot_dimension_numbers<[1], [0], [0], [1], [0, 0, 1, 1], [], []>} : vector<512x27xbf16>, vector<27x64xbf16>, vector<512x64xf32> -> vector<512x64xf32>
    %c0_3 = arith.constant 0 : index
    %c0_4 = arith.constant 0 : index
    %3 = vector.load %arg3[%c0_3, %c0_4] : memref<1x64xf32, #tpu.memory_space<vmem>>, vector<1x64xf32>
    %4 = vector.broadcast %3 : vector<1x64xf32> to vector<512x64xf32>
    %5 = arith.addf %2, %4 : vector<512x64xf32>
    %cst_5 = arith.constant 0.000000e+00 : f32
    %6 = vector.broadcast %cst_5 : f32 to vector<512x64xf32>
    %7 = arith.maximumf %5, %6 : vector<512x64xf32>
    %8 = arith.truncf %7 : vector<512x64xf32> to vector<512x64xbf16>
    %c0_6 = arith.constant 0 : index
    %c0_7 = arith.constant 0 : index
    %9 = vector.load %arg4[%c0_6, %c0_7] : memref<512x64xbf16, #tpu.memory_space<vmem>>, vector<512x64xbf16>
    tpu.vector_store %arg4[%c0_6, %c0_7], %8 {strides = array<i32>} : memref<512x64xbf16, #tpu.memory_space<vmem>>, vector<512x64xbf16>,
    return
  }
  func.func @transform_0(%arg0: i32) -> (i32, i32) {
    %c0_i32 = arith.constant 0 : i32
    %c0_i32_0 = arith.constant 0 : i32
    return %arg0, %c0_i32 : i32, i32
  }
  func.func @transform_1(%arg0: i32) -> (i32, i32) {
    %c0_i32 = arith.constant 0 : i32
    %c0_i32_0 = arith.constant 0 : i32
    %c0_i32_1 = arith.constant 0 : i32
    return %c0_i32, %c0_i32_0 : i32, i32
  }
  func.func @transform_2(%arg0: i32) -> (i32, i32) {
    %c0_i32 = arith.constant 0 : i32
    %c0_i32_0 = arith.constant 0 : i32
    %c0_i32_1 = arith.constant 0 : i32
    return %c0_i32, %c0_i32_0 : i32, i32
  }
  func.func @transform_3(%arg0: i32) -> (i32, i32) {
    %c0_i32 = arith.constant 0 : i32
    %c0_i32_0 = arith.constant 0 : i32
    return %arg0, %c0_i32 : i32, i32
  }
}

</mosaic_0001>

<llo_original>
// kernel: tpu_custom_call.1
$region0: #{tpu_custom_call.1}
  #allocation0 [shape = 'u32[]', space=smem, size = 0x4, offset = 0x4, fixed_abs, tag = 'smem constant byte address 0x4 - core index']
  #allocation1 [shape = 'u32[144,128]{1,0:T(1,128)}', space=vmem, size = 0x12000, scoped, tag = 'internal scratch']
  %s0 = inlined_call_operand.vmem [shape: bf16[512,27], index: 0, kind: input, shape index: {}]
  %s1 = inlined_call_operand.vmem [shape: bf16[27,64], index: 1, kind: input, shape index: {}]
  %s2 = inlined_call_operand.vmem [shape: f32[1,64], index: 2, kind: input, shape index: {}]
  %s3 = inlined_call_operand.vmem [shape: bf16[512,64], index: 3, kind: output, shape index: {}]
  %s4 = sld [smem:[#allocation0]]
  $region22: #{tpu_custom_call.1} parent=0
    _
  %s6 = ssub.s32 1, %s4
  %s7 = scalar_select 0, %s6, %s4
  // Predicated region
  $region2: #{tpu_custom_call.1} parent=0 // pred_check
    _
  $region3: #{tpu_custom_call.1} parent=0 // pred_check_branch
    %9 = sbr.rel (0) target = $region5
  $region4: #{tpu_custom_call.1} parent=0 // pred_region
    _
  $region5: #{tpu_custom_call.1} parent=0 // pred_fallthru
    _
  // Predicated region
  $region6: #{tpu_custom_call.1} parent=0 // pred_check
    _
  $region7: #{tpu_custom_call.1} parent=0 // pred_check_branch
    %11 = sbr.rel (0) target = $region9
  $region8: #{tpu_custom_call.1} parent=0 // pred_region
    _
  $region9: #{tpu_custom_call.1} parent=0 // pred_fallthru
    _
  // Predicated region
  $region10: #{tpu_custom_call.1} parent=0 // pred_check
    _
  $region11: #{tpu_custom_call.1} parent=0 // pred_check_branch
    %13 = sbr.rel (0) target = $region13
  $region12: #{tpu_custom_call.1} parent=0 // pred_region
    _
  $region13: #{tpu_custom_call.1} parent=0 // pred_fallthru
    _
  %v15 = vld [vmem:[%s0] sm:$0xf]
  %v16 = vld [vmem:[%s0 + $0x4] sm:$0xf]
  %v17 = vld [vmem:[%s0 + $0x8] sm:$0xf]
  %v18 = vld [vmem:[%s0 + $0xc] sm:$0xf]
  %v19 = vld [vmem:[%s0 + $0x10] sm:$0xf]
  %v20 = vld [vmem:[%s0 + $0x14] sm:$0xf]
  %v21 = vld [vmem:[%s0 + $0x18] sm:$0xf]
  %v22 = vld [vmem:[%s0 + $0x1c] sm:$0xf]
  %v23 = vld [vmem:[%s0 + $0x20] sm:$0xf]
  %v24 = vld [vmem:[%s0 + $0x24] sm:$0xf]
  %v25 = vld [vmem:[%s0 + $0x28] sm:$0xf]
  %v26 = vld [vmem:[%s0 + $0x2c] sm:$0xf]
  %v27 = vld [vmem:[%s0 + $0x30] sm:$0xf]
  %v28 = vld [vmem:[%s0 + $0x34] sm:$0xf]
  %v29 = vld [vmem:[%s0 + $0x38] sm:$0xf]
  %v30 = vld [vmem:[%s0 + $0x3c] sm:$0xf]
  %v31 = vld [vmem:[%s0 + $0x40] sm:$0xf]
  %v32 = vld [vmem:[%s0 + $0x44] sm:$0xf]
  %v33 = vld [vmem:[%s0 + $0x48] sm:$0xf]
  %v34 = vld [vmem:[%s0 + $0x4c] sm:$0xf]
  %v35 = vld [vmem:[%s0 + $0x50] sm:$0xf]
  %v36 = vld [vmem:[%s0 + $0x54] sm:$0xf]
  %v37 = vld [vmem:[%s0 + $0x58] sm:$0xf]
  %v38 = vld [vmem:[%s0 + $0x5c] sm:$0xf]
  %v39 = vld [vmem:[%s0 + $0x60] sm:$0xf]
  %v40 = vld [vmem:[%s0 + $0x64] sm:$0xf]
  %v41 = vld [vmem:[%s0 + $0x68] sm:$0xf]
  %v42 = vld [vmem:[%s0 + $0x6c] sm:$0xf]
  %v43 = vld [vmem:[%s0 + $0x70] sm:$0xf]
  %v44 = vld [vmem:[%s0 + $0x74] sm:$0xf]
  %v45 = vld [vmem:[%s0 + $0x78] sm:$0xf]
  %v46 = vld [vmem:[%s0 + $0x7c] sm:$0xf]
  %v47 = vld [vmem:[%s0 + $0x80] sm:$0xf]
  %v48 = vld [vmem:[%s0 + $0x84] sm:$0xf]
  %v49 = vld [vmem:[%s0 + $0x88] sm:$0xf]
  %v50 = vld [vmem:[%s0 + $0x8c] sm:$0xf]
  %v51 = vld [vmem:[%s0 + $0x90] sm:$0xf]
  %v52 = vld [vmem:[%s0 + $0x94] sm:$0xf]
  %v53 = vld [vmem:[%s0 + $0x98] sm:$0xf]
  %v54 = vld [vmem:[%s0 + $0x9c] sm:$0xf]
  %v55 = vld [vmem:[%s0 + $0xa0] sm:$0xf]
  %v56 = vld [vmem:[%s0 + $0xa4] sm:$0xf]
  %v57 = vld [vmem:[%s0 + $0xa8] sm:$0xf]
  %v58 = vld [vmem:[%s0 + $0xac] sm:$0xf]
  %v59 = vld [vmem:[%s0 + $0xb0] sm:$0xf]
  %v60 = vld [vmem:[%s0 + $0xb4] sm:$0xf]
  %v61 = vld [vmem:[%s0 + $0xb8] sm:$0xf]
  %v62 = vld [vmem:[%s0 + $0xbc] sm:$0xf]
  %v63 = vld [vmem:[%s0 + $0xc0] sm:$0xf]
  %v64 = vld [vmem:[%s0 + $0xc4] sm:$0xf]
  %v65 = vld [vmem:[%s0 + $0xc8] sm:$0xf]
  %v66 = vld [vmem:[%s0 + $0xcc] sm:$0xf]
  %v67 = vld [vmem:[%s0 + $0xd0] sm:$0xf]
  %v68 = vld [vmem:[%s0 + $0xd4] sm:$0xf]
  %v69 = vld [vmem:[%s0 + $0xd8] sm:$0xf]
  %v70 = vld [vmem:[%s0 + $0xdc] sm:$0xf]
  %v71 = vld [vmem:[%s0 + $0xe0] sm:$0xf]
  %v72 = vld [vmem:[%s0 + $0xe4] sm:$0xf]
  %v73 = vld [vmem:[%s0 + $0xe8] sm:$0xf]
  %v74 = vld [vmem:[%s0 + $0xec] sm:$0xf]
  %v75 = vld [vmem:[%s0 + $0xf0] sm:$0xf]
  %v76 = vld [vmem:[%s0 + $0xf4] sm:$0xf]
  %v77 = vld [vmem:[%s0 + $0xf8] sm:$0xf]
  %v78 = vld [vmem:[%s0 + $0xfc] sm:$0xf]
  %v79 = vld [vmem:[%s1] sm:$0xf]
  %v80 = vld [vmem:[%s1 + $0x4] sm:$0xf]
  %v81 = vld [vmem:[%s1 + $0x8] sm:$0xf]
  %v82 = vld [vmem:[%s1 + $0xc] sm:$0x3]
  %v83 = vld [vmem:[%s2] sm:$0x1]
  %v85 = vlaneseq
  %v86 = vshrl.u32 %v85, 7
  %v87 = vsub.s32 0, %v86
  %v88 = vrot.slane %v83, %v87
  %v154 = vunpack.c.l.b16 %v15
  %v155 = vunpack.c.l.b16 %v16
  %v156 = vunpack.c.l.b16 %v17
  %v157 = vunpack.c.l.b16 %v18
  %v158 = vunpack.c.l.b16 %v19
  %v159 = vunpack.c.l.b16 %v20
  %v160 = vunpack.c.l.b16 %v21
  %v161 = vunpack.c.l.b16 %v22
  %v162 = vunpack.c.l.b16 %v23
  %v163 = vunpack.c.l.b16 %v24
  %v164 = vunpack.c.l.b16 %v25
  %v165 = vunpack.c.l.b16 %v26
  %v166 = vunpack.c.l.b16 %v27
  %v167 = vunpack.c.l.b16 %v28
  %v168 = vunpack.c.l.b16 %v29
  %v169 = vunpack.c.l.b16 %v30
  %v170 = vunpack.c.l.b16 %v31
  %v171 = vunpack.c.l.b16 %v32
  %v172 = vunpack.c.l.b16 %v33
  %v173 = vunpack.c.l.b16 %v34
  %v174 = vunpack.c.l.b16 %v35
  %v175 = vunpack.c.l.b16 %v36
  %v176 = vunpack.c.l.b16 %v37
  %v177 = vunpack.c.l.b16 %v38
  %v178 = vunpack.c.l.b16 %v39
  %v179 = vunpack.c.l.b16 %v40
  %v180 = vunpack.c.l.b16 %v41
  %v181 = vunpack.c.l.b16 %v42
  %v182 = vunpack.c.l.b16 %v43
  %v183 = vunpack.c.l.b16 %v44
  %v184 = vunpack.c.l.b16 %v45
  %v185 = vunpack.c.l.b16 %v46
  %v186 = vunpack.c.l.b16 %v47
  %v187 = vunpack.c.l.b16 %v48
  %v188 = vunpack.c.l.b16 %v49
  %v189 = vunpack.c.l.b16 %v50
  %v190 = vunpack.c.l.b16 %v51
  %v191 = vunpack.c.l.b16 %v52
  %v192 = vunpack.c.l.b16 %v53
  %v193 = vunpack.c.l.b16 %v54
  %v194 = vunpack.c.l.b16 %v55
  %v195 = vunpack.c.l.b16 %v56
  %v196 = vunpack.c.l.b16 %v57
  %v197 = vunpack.c.l.b16 %v58
  %v198 = vunpack.c.l.b16 %v59
  %v199 = vunpack.c.l.b16 %v60
  %v200 = vunpack.c.l.b16 %v61
  %v201 = vunpack.c.l.b16 %v62
  %v202 = vunpack.c.l.b16 %v63
  %v203 = vunpack.c.l.b16 %v64
  %v204 = vunpack.c.l.b16 %v65
  %v205 = vunpack.c.l.b16 %v66
  %v206 = vunpack.c.l.b16 %v67
  %v207 = vunpack.c.l.b16 %v68
  %v208 = vunpack.c.l.b16 %v69
  %v209 = vunpack.c.l.b16 %v70
  %v210 = vunpack.c.l.b16 %v71
  %v211 = vunpack.c.l.b16 %v72
  %v212 = vunpack.c.l.b16 %v73
  %v213 = vunpack.c.l.b16 %v74
  %v214 = vunpack.c.l.b16 %v75
  %v215 = vunpack.c.l.b16 %v76
  %v216 = vunpack.c.l.b16 %v77
  %v217 = vunpack.c.l.b16 %v78
  %v218 = vpack.c.b16 %v155, %v154
  %v219 = vpack.c.b16 %v157, %v156
  %v220 = vpack.c.b16 %v159, %v158
  %v221 = vpack.c.b16 %v161, %v160
  %v222 = vpack.c.b16 %v163, %v162
  %v223 = vpack.c.b16 %v165, %v164
  %v224 = vpack.c.b16 %v167, %v166
  %v225 = vpack.c.b16 %v169, %v168
  %v226 = vpack.c.b16 %v171, %v170
  %v227 = vpack.c.b16 %v173, %v172
  %v228 = vpack.c.b16 %v175, %v174
  %v229 = vpack.c.b16 %v177, %v176
  %v230 = vpack.c.b16 %v179, %v178
  %v231 = vpack.c.b16 %v181, %v180
  %v232 = vpack.c.b16 %v183, %v182
  %v233 = vpack.c.b16 %v185, %v184
  %v234 = vpack.c.b16 %v187, %v186
  %v235 = vpack.c.b16 %v189, %v188
  %v236 = vpack.c.b16 %v191, %v190
  %v237 = vpack.c.b16 %v193, %v192
  %v238 = vpack.c.b16 %v195, %v194
  %v239 = vpack.c.b16 %v197, %v196
  %v240 = vpack.c.b16 %v199, %v198
  %v241 = vpack.c.b16 %v201, %v200
  %v242 = vpack.c.b16 %v203, %v202
  %v243 = vpack.c.b16 %v205, %v204
  %v244 = vpack.c.b16 %v207, %v206
  %v245 = vpack.c.b16 %v209, %v208
  %v246 = vpack.c.b16 %v211, %v210
  %v247 = vpack.c.b16 %v213, %v212
  %v248 = vpack.c.b16 %v215, %v214
  %v249 = vpack.c.b16 %v217, %v216
  %v254 = vunpack.c.l.b16 %v79
  %v255 = vunpack.c.l.b16 %v80
  %v256 = vunpack.c.l.b16 %v81
  %v257 = vunpack.c.l.b16 %v82
  %v258 = vpack.c.b16 %v255, %v254
  %v259 = vpack.c.b16 %v257, %v256
  %vm261 = vcmask 220160
  %v263 = vsel %vm261, %v218, 0
  %v266 = vsel %vm261, %v219, 0
  %v269 = vsel %vm261, %v220, 0
  %v272 = vsel %vm261, %v221, 0
  %v275 = vsel %vm261, %v222, 0
  %v278 = vsel %vm261, %v223, 0
  %v281 = vsel %vm261, %v224, 0
  %v284 = vsel %vm261, %v225, 0
  %v287 = vsel %vm261, %v226, 0
  %v290 = vsel %vm261, %v227, 0
  %v293 = vsel %vm261, %v228, 0
  %v296 = vsel %vm261, %v229, 0
  %v299 = vsel %vm261, %v230, 0
  %v302 = vsel %vm261, %v231, 0
  %v305 = vsel %vm261, %v232, 0
  %v308 = vsel %vm261, %v233, 0
  %v311 = vsel %vm261, %v234, 0
  %v314 = vsel %vm261, %v235, 0
  %v317 = vsel %vm261, %v236, 0
  %v320 = vsel %vm261, %v237, 0
  %v323 = vsel %vm261, %v238, 0
  %v326 = vsel %vm261, %v239, 0
  %v329 = vsel %vm261, %v240, 0
  %v332 = vsel %vm261, %v241, 0
  %v335 = vsel %vm261, %v242, 0
  %v338 = vsel %vm261, %v243, 0
  %v341 = vsel %vm261, %v244, 0
  %v344 = vsel %vm261, %v245, 0
  %v347 = vsel %vm261, %v246, 0
  %v350 = vsel %vm261, %v247, 0
  %v353 = vsel %vm261, %v248, 0
  %v356 = vsel %vm261, %v249, 0
  %vm358 = vcmask 1044480
  %vm359 = vcmask 1045504
  %v360 = vsel %vm358, 4294967295, 65535
  %v361 = vsel %vm359, %v360, 0
  %v363 = vand.u32 %v259, %v361
  %365 = vmatprep.subr.bf16.mxu0 0
  %366 = vmatpush1.bf16.msra.mxu0 0
  %367 = vmatprep.subr.bf16.mxu0 0
  %368 = vmatpush1.bf16.msra.mxu0 0
  %369 = vmatprep.subr.bf16.mxu0 0
  %370 = vmatpush1.bf16.msra.mxu0 0
  %371 = vmatprep.subr.bf16.mxu0 0
  %372 = vmatpush1.bf16.msra.mxu0 0
  %373 = vmatprep.subr.bf16.mxu0 0
  %374 = vmatpush1.bf16.msra.mxu0 0
  %375 = vmatprep.subr.bf16.mxu0 0
  %376 = vmatpush1.bf16.msra.mxu0 0
  %377 = vmatprep.subr.bf16.mxu0 0
  %378 = vmatpush1.bf16.msra.mxu0 %v363
  %379 = vmatprep.subr.bf16.mxu0 0
  %380 = vmatpush1.bf16.msra.mxu0 %v258
  %381 = vmatprep.subr.bf16.mxu0 0
  %382 = vmatpush2.bf16.msra.mxu0 0
  %383 = vmatprep.subr.bf16.mxu0 0
  %384 = vmatpush2.bf16.msra.mxu0 0
  %385 = vmatprep.subr.bf16.mxu0 0
  %386 = vmatpush2.bf16.msra.mxu0 0
  %387 = vmatprep.subr.bf16.mxu0 0
  %388 = vmatpush2.bf16.msra.mxu0 0
  %389 = vmatprep.subr.bf16.mxu0 0
  %390 = vmatpush2.bf16.msra.mxu0 0
  %391 = vmatprep.subr.bf16.mxu0 0
  %392 = vmatpush2.bf16.msra.mxu0 0
  %393 = vmatprep.subr.bf16.mxu0 0
  %394 = vmatpush2.bf16.msra.mxu0 0
  %395 = vmatprep.subr.bf16.mxu0 0
  %396 = vmatpush2.bf16.msra.mxu0 0
  %397 = vmatprep.mubr.bf16.mxu0 0
  %398 = vmatmul.mubr.bf16.gmra.mxu0 %v263
  %v399 = vpop.f32.mrf.mxu0
  %v400 = vadd.f32 %v88, %v399
  %v401 = vpop.f32.mrf.mxu0
  %v402 = vpop.f32.mrf.mxu0
  %v403 = vadd.f32 %v88, %v402
  %v404 = vpop.f32.mrf.mxu0
  %405 = vmatprep.mubr.bf16.mxu0 0
  %406 = vmatmul.mubr.bf16.gmra.mxu0 %v266
  %v407 = vpop.f32.mrf.mxu0
  %v408 = vadd.f32 %v88, %v407
  %v409 = vpop.f32.mrf.mxu0
  %v410 = vpop.f32.mrf.mxu0
  %v411 = vadd.f32 %v88, %v410
  %v412 = vpop.f32.mrf.mxu0
  %413 = vmatprep.mubr.bf16.mxu0 0
  %414 = vmatmul.mubr.bf16.gmra.mxu0 %v269
  %v415 = vpop.f32.mrf.mxu0
  %v416 = vadd.f32 %v88, %v415
  %v417 = vpop.f32.mrf.mxu0
  %v418 = vpop.f32.mrf.mxu0
  %v419 = vadd.f32 %v88, %v418
  %v420 = vpop.f32.mrf.mxu0
  %421 = vmatprep.mubr.bf16.mxu0 0
  %422 = vmatmul.mubr.bf16.gmra.mxu0 %v272
  %v423 = vpop.f32.mrf.mxu0
  %v424 = vadd.f32 %v88, %v423
  %v425 = vpop.f32.mrf.mxu0
  %v426 = vpop.f32.mrf.mxu0
  %v427 = vadd.f32 %v88, %v426
  %v428 = vpop.f32.mrf.mxu0
  %429 = vmatprep.mubr.bf16.mxu0 0
  %430 = vmatmul.mubr.bf16.gmra.mxu0 %v275
  %v431 = vpop.f32.mrf.mxu0
  %v432 = vadd.f32 %v88, %v431
  %v433 = vpop.f32.mrf.mxu0
  %v434 = vpop.f32.mrf.mxu0
  %v435 = vadd.f32 %v88, %v434
  %v436 = vpop.f32.mrf.mxu0
  %437 = vmatprep.mubr.bf16.mxu0 0
  %438 = vmatmul.mubr.bf16.gmra.mxu0 %v278
  %v439 = vpop.f32.mrf.mxu0
  %v440 = vadd.f32 %v88, %v439
  %v441 = vpop.f32.mrf.mxu0
  %v442 = vpop.f32.mrf.mxu0
  %v443 = vadd.f32 %v88, %v442
  %v444 = vpop.f32.mrf.mxu0
  %445 = vmatprep.mubr.bf16.mxu0 0
  %446 = vmatmul.mubr.bf16.gmra.mxu0 %v281
  %v447 = vpop.f32.mrf.mxu0
  %v448 = vadd.f32 %v88, %v447
  %v449 = vpop.f32.mrf.mxu0
  %v450 = vpop.f32.mrf.mxu0
  %v451 = vadd.f32 %v88, %v450
  %v452 = vpop.f32.mrf.mxu0
  %453 = vmatprep.mubr.bf16.mxu0 0
  %454 = vmatmul.mubr.bf16.gmra.mxu0 %v284
  %v455 = vpop.f32.mrf.mxu0
  %v456 = vadd.f32 %v88, %v455
  %v457 = vpop.f32.mrf.mxu0
  %v458 = vpop.f32.mrf.mxu0
  %v459 = vadd.f32 %v88, %v458
  %v460 = vpop.f32.mrf.mxu0
  %461 = vmatprep.mubr.bf16.mxu0 0
  %462 = vmatmul.mubr.bf16.gmra.mxu0 %v287
  %v463 = vpop.f32.mrf.mxu0
  %v464 = vadd.f32 %v88, %v463
  %v465 = vpop.f32.mrf.mxu0
  %v466 = vpop.f32.mrf.mxu0
  %v467 = vadd.f32 %v88, %v466
  %v468 = vpop.f32.mrf.mxu0
  %469 = vmatprep.mubr.bf16.mxu0 0
  %470 = vmatmul.mubr.bf16.gmra.mxu0 %v290
  %v471 = vpop.f32.mrf.mxu0
  %v472 = vadd.f32 %v88, %v471
  %v473 = vpop.f32.mrf.mxu0
  %v474 = vpop.f32.mrf.mxu0
  %v475 = vadd.f32 %v88, %v474
  %v476 = vpop.f32.mrf.mxu0
  %477 = vmatprep.mubr.bf16.mxu0 0
  %478 = vmatmul.mubr.bf16.gmra.mxu0 %v293
  %v479 = vpop.f32.mrf.mxu0
  %v480 = vadd.f32 %v88, %v479
  %v481 = vpop.f32.mrf.mxu0
  %v482 = vpop.f32.mrf.mxu0
  %v483 = vadd.f32 %v88, %v482
  %v484 = vpop.f32.mrf.mxu0
  %485 = vmatprep.mubr.bf16.mxu0 0
  %486 = vmatmul.mubr.bf16.gmra.mxu0 %v296
  %v487 = vpop.f32.mrf.mxu0
  %v488 = vadd.f32 %v88, %v487
  %v489 = vpop.f32.mrf.mxu0
  %v490 = vpop.f32.mrf.mxu0
  %v491 = vadd.f32 %v88, %v490
  %v492 = vpop.f32.mrf.mxu0
  %493 = vmatprep.mubr.bf16.mxu0 0
  %494 = vmatmul.mubr.bf16.gmra.mxu0 %v299
  %v495 = vpop.f32.mrf.mxu0
  %v496 = vadd.f32 %v88, %v495
  %v497 = vpop.f32.mrf.mxu0
  %v498 = vpop.f32.mrf.mxu0
  %v499 = vadd.f32 %v88, %v498
  %v500 = vpop.f32.mrf.mxu0
  %501 = vmatprep.mubr.bf16.mxu0 0
  %502 = vmatmul.mubr.bf16.gmra.mxu0 %v302
  %v503 = vpop.f32.mrf.mxu0
  %v504 = vadd.f32 %v88, %v503
  %v505 = vpop.f32.mrf.mxu0
  %v506 = vpop.f32.mrf.mxu0
  %v507 = vadd.f32 %v88, %v506
  %v508 = vpop.f32.mrf.mxu0
  %509 = vmatprep.mubr.bf16.mxu0 0
  %510 = vmatmul.mubr.bf16.gmra.mxu0 %v305
  %v511 = vpop.f32.mrf.mxu0
  %v512 = vadd.f32 %v88, %v511
  %v513 = vpop.f32.mrf.mxu0
  %v514 = vpop.f32.mrf.mxu0
  %v515 = vadd.f32 %v88, %v514
  %v516 = vpop.f32.mrf.mxu0
  %517 = vmatprep.mubr.bf16.mxu0 0
  %518 = vmatmul.mubr.bf16.gmra.mxu0 %v308
  %v519 = vpop.f32.mrf.mxu0
  %v520 = vadd.f32 %v88, %v519
  %v521 = vpop.f32.mrf.mxu0
  %v522 = vpop.f32.mrf.mxu0
  %v523 = vadd.f32 %v88, %v522
  %v524 = vpop.f32.mrf.mxu0
  %525 = vmatprep.mubr.bf16.mxu0 0
  %526 = vmatmul.mubr.bf16.gmra.mxu0 %v311
  %v527 = vpop.f32.mrf.mxu0
  %v528 = vadd.f32 %v88, %v527
  %v529 = vpop.f32.mrf.mxu0
  %v530 = vpop.f32.mrf.mxu0
  %v531 = vadd.f32 %v88, %v530
  %v532 = vpop.f32.mrf.mxu0
  %533 = vmatprep.mubr.bf16.mxu0 0
  %534 = vmatmul.mubr.bf16.gmra.mxu0 %v314
  %v535 = vpop.f32.mrf.mxu0
  %v536 = vadd.f32 %v88, %v535
  %v537 = vpop.f32.mrf.mxu0
  %v538 = vpop.f32.mrf.mxu0
  %v539 = vadd.f32 %v88, %v538
  %v540 = vpop.f32.mrf.mxu0
  %541 = vmatprep.mubr.bf16.mxu0 0
  %542 = vmatmul.mubr.bf16.gmra.mxu0 %v317
  %v543 = vpop.f32.mrf.mxu0
  %v544 = vadd.f32 %v88, %v543
  %v545 = vpop.f32.mrf.mxu0
  %v546 = vpop.f32.mrf.mxu0
  %v547 = vadd.f32 %v88, %v546
  %v548 = vpop.f32.mrf.mxu0
  %549 = vmatprep.mubr.bf16.mxu0 0
  %550 = vmatmul.mubr.bf16.gmra.mxu0 %v320
  %v551 = vpop.f32.mrf.mxu0
  %v552 = vadd.f32 %v88, %v551
  %v553 = vpop.f32.mrf.mxu0
  %v554 = vpop.f32.mrf.mxu0
  %v555 = vadd.f32 %v88, %v554
  %v556 = vpop.f32.mrf.mxu0
  %557 = vmatprep.mubr.bf16.mxu0 0
  %558 = vmatmul.mubr.bf16.gmra.mxu0 %v323
  %v559 = vpop.f32.mrf.mxu0
  %v560 = vadd.f32 %v88, %v559
  %v561 = vpop.f32.mrf.mxu0
  %v562 = vpop.f32.mrf.mxu0
  %v563 = vadd.f32 %v88, %v562
  %v564 = vpop.f32.mrf.mxu0
  %565 = vmatprep.mubr.bf16.mxu0 0
  %566 = vmatmul.mubr.bf16.gmra.mxu0 %v326
  %v567 = vpop.f32.mrf.mxu0
  %v568 = vadd.f32 %v88, %v567
  %v569 = vpop.f32.mrf.mxu0
  %v570 = vpop.f32.mrf.mxu0
  %v571 = vadd.f32 %v88, %v570
  %v572 = vpop.f32.mrf.mxu0
  %573 = vmatprep.mubr.bf16.mxu0 0
  %574 = vmatmul.mubr.bf16.gmra.mxu0 %v329
  %v575 = vpop.f32.mrf.mxu0
  %v576 = vadd.f32 %v88, %v575
  %v577 = vpop.f32.mrf.mxu0
  %v578 = vpop.f32.mrf.mxu0
  %v579 = vadd.f32 %v88, %v578
  %v580 = vpop.f32.mrf.mxu0
  %581 = vmatprep.mubr.bf16.mxu0 0
  %582 = vmatmul.mubr.bf16.gmra.mxu0 %v332
  %v583 = vpop.f32.mrf.mxu0
  %v584 = vadd.f32 %v88, %v583
  %v585 = vpop.f32.mrf.mxu0
  %v586 = vpop.f32.mrf.mxu0
  %v587 = vadd.f32 %v88, %v586
  %v588 = vpop.f32.mrf.mxu0
  %589 = vmatprep.mubr.bf16.mxu0 0
  %590 = vmatmul.mubr.bf16.gmra.mxu0 %v335
  %v591 = vpop.f32.mrf.mxu0
  %v592 = vadd.f32 %v88, %v591
  %v593 = vpop.f32.mrf.mxu0
  %v594 = vpop.f32.mrf.mxu0
  %v595 = vadd.f32 %v88, %v594
  %v596 = vpop.f32.mrf.mxu0
  %597 = vmatprep.mubr.bf16.mxu0 0
  %598 = vmatmul.mubr.bf16.gmra.mxu0 %v338
  %v599 = vpop.f32.mrf.mxu0
  %v600 = vadd.f32 %v88, %v599
  %v601 = vpop.f32.mrf.mxu0
  %v602 = vpop.f32.mrf.mxu0
  %v603 = vadd.f32 %v88, %v602
  %v604 = vpop.f32.mrf.mxu0
  %605 = vmatprep.mubr.bf16.mxu0 0
  %606 = vmatmul.mubr.bf16.gmra.mxu0 %v341
  %v607 = vpop.f32.mrf.mxu0
  %v608 = vadd.f32 %v88, %v607
  %v609 = vpop.f32.mrf.mxu0
  %v610 = vpop.f32.mrf.mxu0
  %v611 = vadd.f32 %v88, %v610
  %v612 = vpop.f32.mrf.mxu0
  %613 = vmatprep.mubr.bf16.mxu0 0
  %614 = vmatmul.mubr.bf16.gmra.mxu0 %v344
  %v615 = vpop.f32.mrf.mxu0
  %v616 = vadd.f32 %v88, %v615
  %v617 = vpop.f32.mrf.mxu0
  %v618 = vpop.f32.mrf.mxu0
  %v619 = vadd.f32 %v88, %v618
  %v620 = vpop.f32.mrf.mxu0
  %621 = vmatprep.mubr.bf16.mxu0 0
  %622 = vmatmul.mubr.bf16.gmra.mxu0 %v347
  %v623 = vpop.f32.mrf.mxu0
  %v624 = vadd.f32 %v88, %v623
  %v625 = vpop.f32.mrf.mxu0
  %v626 = vpop.f32.mrf.mxu0
  %v627 = vadd.f32 %v88, %v626
  %v628 = vpop.f32.mrf.mxu0
  %629 = vmatprep.mubr.bf16.mxu0 0
  %630 = vmatmul.mubr.bf16.gmra.mxu0 %v350
  %v631 = vpop.f32.mrf.mxu0
  %v632 = vadd.f32 %v88, %v631
  %v633 = vpop.f32.mrf.mxu0
  %v634 = vpop.f32.mrf.mxu0
  %v635 = vadd.f32 %v88, %v634
  %v636 = vpop.f32.mrf.mxu0
  %637 = vmatprep.mubr.bf16.mxu0 0
  %638 = vmatmul.mubr.bf16.gmra.mxu0 %v353
  %v639 = vpop.f32.mrf.mxu0
  %v640 = vadd.f32 %v88, %v639
  %v641 = vpop.f32.mrf.mxu0
  %v642 = vpop.f32.mrf.mxu0
  %v643 = vadd.f32 %v88, %v642
  %v644 = vpop.f32.mrf.mxu0
  %645 = vmatprep.mubr.bf16.mxu0 0
  %646 = vmatmul.mubr.bf16.gmra.mxu0 %v356
  %v647 = vpop.f32.mrf.mxu0
  %v648 = vadd.f32 %v88, %v647
  %v649 = vpop.f32.mrf.mxu0
  %v650 = vpop.f32.mrf.mxu0
  %v651 = vadd.f32 %v88, %v650
  %v652 = vpop.f32.mrf.mxu0
  %653 = vdwg.mxu0
  %v654 = vmax.f32 %v400, 0.0
  %v655 = vmax.f32 %v403, 0.0
  %v656 = vmax.f32 %v408, 0.0
  %v657 = vmax.f32 %v411, 0.0
  %v658 = vmax.f32 %v416, 0.0
  %v659 = vmax.f32 %v419, 0.0
  %v660 = vmax.f32 %v424, 0.0
  %v661 = vmax.f32 %v427, 0.0
  %v662 = vmax.f32 %v432, 0.0
  %v663 = vmax.f32 %v435, 0.0
  %v664 = vmax.f32 %v440, 0.0
  %v665 = vmax.f32 %v443, 0.0
  %v666 = vmax.f32 %v448, 0.0
  %v667 = vmax.f32 %v451, 0.0
  %v668 = vmax.f32 %v456, 0.0
  %v669 = vmax.f32 %v459, 0.0
  %v670 = vmax.f32 %v464, 0.0
  %v671 = vmax.f32 %v467, 0.0
  %v672 = vmax.f32 %v472, 0.0
  %v673 = vmax.f32 %v475, 0.0
  %v674 = vmax.f32 %v480, 0.0
  %v675 = vmax.f32 %v483, 0.0
  %v676 = vmax.f32 %v488, 0.0
  %v677 = vmax.f32 %v491, 0.0
  %v678 = vmax.f32 %v496, 0.0
  %v679 = vmax.f32 %v499, 0.0
  %v680 = vmax.f32 %v504, 0.0
  %v681 = vmax.f32 %v507, 0.0
  %v682 = vmax.f32 %v512, 0.0
  %v683 = vmax.f32 %v515, 0.0
  %v684 = vmax.f32 %v520, 0.0
  %v685 = vmax.f32 %v523, 0.0
  %v686 = vmax.f32 %v528, 0.0
  %v687 = vmax.f32 %v531, 0.0
  %v688 = vmax.f32 %v536, 0.0
  %v689 = vmax.f32 %v539, 0.0
  %v690 = vmax.f32 %v544, 0.0
  %v691 = vmax.f32 %v547, 0.0
  %v692 = vmax.f32 %v552, 0.0
  %v693 = vmax.f32 %v555, 0.0
  %v694 = vmax.f32 %v560, 0.0
  %v695 = vmax.f32 %v563, 0.0
  %v696 = vmax.f32 %v568, 0.0
  %v697 = vmax.f32 %v571, 0.0
  %v698 = vmax.f32 %v576, 0.0
  %v699 = vmax.f32 %v579, 0.0
  %v700 = vmax.f32 %v584, 0.0
  %v701 = vmax.f32 %v587, 0.0
  %v702 = vmax.f32 %v592, 0.0
  %v703 = vmax.f32 %v595, 0.0
  %v704 = vmax.f32 %v600, 0.0
  %v705 = vmax.f32 %v603, 0.0
  %v706 = vmax.f32 %v608, 0.0
  %v707 = vmax.f32 %v611, 0.0
  %v708 = vmax.f32 %v616, 0.0
  %v709 = vmax.f32 %v619, 0.0
  %v710 = vmax.f32 %v624, 0.0
  %v711 = vmax.f32 %v627, 0.0
  %v712 = vmax.f32 %v632, 0.0
  %v713 = vmax.f32 %v635, 0.0
  %v714 = vmax.f32 %v640, 0.0
  %v715 = vmax.f32 %v643, 0.0
  %v716 = vmax.f32 %v648, 0.0
  %v717 = vmax.f32 %v651, 0.0
  %v718 = vpack.c.bf16 %v655, %v654
  %v719 = vpack.c.bf16 %v657, %v656
  %v720 = vpack.c.bf16 %v659, %v658
  %v721 = vpack.c.bf16 %v661, %v660
  %v722 = vpack.c.bf16 %v663, %v662
  %v723 = vpack.c.bf16 %v665, %v664
  %v724 = vpack.c.bf16 %v667, %v666
  %v725 = vpack.c.bf16 %v669, %v668
  %v726 = vpack.c.bf16 %v671, %v670
  %v727 = vpack.c.bf16 %v673, %v672
  %v728 = vpack.c.bf16 %v675, %v674
  %v729 = vpack.c.bf16 %v677, %v676
  %v730 = vpack.c.bf16 %v679, %v678
  %v731 = vpack.c.bf16 %v681, %v680
  %v732 = vpack.c.bf16 %v683, %v682
  %v733 = vpack.c.bf16 %v685, %v684
  %v734 = vpack.c.bf16 %v687, %v686
  %v735 = vpack.c.bf16 %v689, %v688
  %v736 = vpack.c.bf16 %v691, %v690
  %v737 = vpack.c.bf16 %v693, %v692
  %v738 = vpack.c.bf16 %v695, %v694
  %v739 = vpack.c.bf16 %v697, %v696
  %v740 = vpack.c.bf16 %v699, %v698
  %v741 = vpack.c.bf16 %v701, %v700
  %v742 = vpack.c.bf16 %v703, %v702
  %v743 = vpack.c.bf16 %v705, %v704
  %v744 = vpack.c.bf16 %v707, %v706
  %v745 = vpack.c.bf16 %v709, %v708
  %v746 = vpack.c.bf16 %v711, %v710
  %v747 = vpack.c.bf16 %v713, %v712
  %v748 = vpack.c.bf16 %v715, %v714
  %v749 = vpack.c.bf16 %v717, %v716
  %v782 = vunpack.c.l.b16 %v718
  %v783 = vunpack.c.h.b16 %v718
  %v784 = vunpack.c.l.b16 %v719
  %v785 = vunpack.c.h.b16 %v719
  %v786 = vunpack.c.l.b16 %v720
  %v787 = vunpack.c.h.b16 %v720
  %v788 = vunpack.c.l.b16 %v721
  %v789 = vunpack.c.h.b16 %v721
  %v790 = vunpack.c.l.b16 %v722
  %v791 = vunpack.c.h.b16 %v722
  %v792 = vunpack.c.l.b16 %v723
  %v793 = vunpack.c.h.b16 %v723
  %v794 = vunpack.c.l.b16 %v724
  %v795 = vunpack.c.h.b16 %v724
  %v796 = vunpack.c.l.b16 %v725
  %v797 = vunpack.c.h.b16 %v725
  %v798 = vunpack.c.l.b16 %v726
  %v799 = vunpack.c.h.b16 %v726
  %v800 = vunpack.c.l.b16 %v727
  %v801 = vunpack.c.h.b16 %v727
  %v802 = vunpack.c.l.b16 %v728
  %v803 = vunpack.c.h.b16 %v728
  %v804 = vunpack.c.l.b16 %v729
  %v805 = vunpack.c.h.b16 %v729
  %v806 = vunpack.c.l.b16 %v730
  %v807 = vunpack.c.h.b16 %v730
  %v808 = vunpack.c.l.b16 %v731
  %v809 = vunpack.c.h.b16 %v731
  %v810 = vunpack.c.l.b16 %v732
  %v811 = vunpack.c.h.b16 %v732
  %v812 = vunpack.c.l.b16 %v733
  %v813 = vunpack.c.h.b16 %v733
  %v814 = vunpack.c.l.b16 %v734
  %v815 = vunpack.c.h.b16 %v734
  %v816 = vunpack.c.l.b16 %v735
  %v817 = vunpack.c.h.b16 %v735
  %v818 = vunpack.c.l.b16 %v736
  %v819 = vunpack.c.h.b16 %v736
  %v820 = vunpack.c.l.b16 %v737
  %v821 = vunpack.c.h.b16 %v737
  %v822 = vunpack.c.l.b16 %v738
  %v823 = vunpack.c.h.b16 %v738
  %v824 = vunpack.c.l.b16 %v739
  %v825 = vunpack.c.h.b16 %v739
  %v826 = vunpack.c.l.b16 %v740
  %v827 = vunpack.c.h.b16 %v740
  %v828 = vunpack.c.l.b16 %v741
  %v829 = vunpack.c.h.b16 %v741
  %v830 = vunpack.c.l.b16 %v742
  %v831 = vunpack.c.h.b16 %v742
  %v832 = vunpack.c.l.b16 %v743
  %v833 = vunpack.c.h.b16 %v743
  %v834 = vunpack.c.l.b16 %v744
  %v835 = vunpack.c.h.b16 %v744
  %v836 = vunpack.c.l.b16 %v745
  %v837 = vunpack.c.h.b16 %v745
  %v838 = vunpack.c.l.b16 %v746
  %v839 = vunpack.c.h.b16 %v746
  %v840 = vunpack.c.l.b16 %v747
  %v841 = vunpack.c.h.b16 %v747
  %v842 = vunpack.c.l.b16 %v748
  %v843 = vunpack.c.h.b16 %v748
  %v844 = vunpack.c.l.b16 %v749
  %v845 = vunpack.c.h.b16 %v749
  %v846 = vpack.c.b16 %v782, %v782
  %v847 = vpack.c.b16 %v783, %v783
  %v848 = vpack.c.b16 %v784, %v784
  %v849 = vpack.c.b16 %v785, %v785
  %v850 = vpack.c.b16 %v786, %v786
  %v851 = vpack.c.b16 %v787, %v787
  %v852 = vpack.c.b16 %v788, %v788
  %v853 = vpack.c.b16 %v789, %v789
  %v854 = vpack.c.b16 %v790, %v790
  %v855 = vpack.c.b16 %v791, %v791
  %v856 = vpack.c.b16 %v792, %v792
  %v857 = vpack.c.b16 %v793, %v793
  %v858 = vpack.c.b16 %v794, %v794
  %v859 = vpack.c.b16 %v795, %v795
  %v860 = vpack.c.b16 %v796, %v796
  %v861 = vpack.c.b16 %v797, %v797
  %v862 = vpack.c.b16 %v798, %v798
  %v863 = vpack.c.b16 %v799, %v799
  %v864 = vpack.c.b16 %v800, %v800
  %v865 = vpack.c.b16 %v801, %v801
  %v866 = vpack.c.b16 %v802, %v802
  %v867 = vpack.c.b16 %v803, %v803
  %v868 = vpack.c.b16 %v804, %v804
  %v869 = vpack.c.b16 %v805, %v805
  %v870 = vpack.c.b16 %v806, %v806
  %v871 = vpack.c.b16 %v807, %v807
  %v872 = vpack.c.b16 %v808, %v808
  %v873 = vpack.c.b16 %v809, %v809
  %v874 = vpack.c.b16 %v810, %v810
  %v875 = vpack.c.b16 %v811, %v811
  %v876 = vpack.c.b16 %v812, %v812
  %v877 = vpack.c.b16 %v813, %v813
  %v878 = vpack.c.b16 %v814, %v814
  %v879 = vpack.c.b16 %v815, %v815
  %v880 = vpack.c.b16 %v816, %v816
  %v881 = vpack.c.b16 %v817, %v817
  %v882 = vpack.c.b16 %v818, %v818
  %v883 = vpack.c.b16 %v819, %v819
  %v884 = vpack.c.b16 %v820, %v820
  %v885 = vpack.c.b16 %v821, %v821
  %v886 = vpack.c.b16 %v822, %v822
  %v887 = vpack.c.b16 %v823, %v823
  %v888 = vpack.c.b16 %v824, %v824
  %v889 = vpack.c.b16 %v825, %v825
  %v890 = vpack.c.b16 %v826, %v826
  %v891 = vpack.c.b16 %v827, %v827
  %v892 = vpack.c.b16 %v828, %v828
  %v893 = vpack.c.b16 %v829, %v829
  %v894 = vpack.c.b16 %v830, %v830
  %v895 = vpack.c.b16 %v831, %v831
  %v896 = vpack.c.b16 %v832, %v832
  %v897 = vpack.c.b16 %v833, %v833
  %v898 = vpack.c.b16 %v834, %v834
  %v899 = vpack.c.b16 %v835, %v835
  %v900 = vpack.c.b16 %v836, %v836
  %v901 = vpack.c.b16 %v837, %v837
  %v902 = vpack.c.b16 %v838, %v838
  %v903 = vpack.c.b16 %v839, %v839
  %v904 = vpack.c.b16 %v840, %v840
  %v905 = vpack.c.b16 %v841, %v841
  %v906 = vpack.c.b16 %v842, %v842
  %v907 = vpack.c.b16 %v843, %v843
  %v908 = vpack.c.b16 %v844, %v844
  %v909 = vpack.c.b16 %v845, %v845
  %vm974 = vcmask 519168
  %975 = vst.msk [vmem:[%s3] sm:$0xf] %vm974, %v846
  %976 = vst.msk [vmem:[%s3 + $0x4] sm:$0xf] %vm974, %v847
  %977 = vst.msk [vmem:[%s3 + $0x8] sm:$0xf] %vm974, %v848
  %978 = vst.msk [vmem:[%s3 + $0xc] sm:$0xf] %vm974, %v849
  %979 = vst.msk [vmem:[%s3 + $0x10] sm:$0xf] %vm974, %v850
  %980 = vst.msk [vmem:[%s3 + $0x14] sm:$0xf] %vm974, %v851
  %981 = vst.msk [vmem:[%s3 + $0x18] sm:$0xf] %vm974, %v852
  %982 = vst.msk [vmem:[%s3 + $0x1c] sm:$0xf] %vm974, %v853
  %983 = vst.msk [vmem:[%s3 + $0x20] sm:$0xf] %vm974, %v854
  %984 = vst.msk [vmem:[%s3 + $0x24] sm:$0xf] %vm974, %v855
  %985 = vst.msk [vmem:[%s3 + $0x28] sm:$0xf] %vm974, %v856
  %986 = vst.msk [vmem:[%s3 + $0x2c] sm:$0xf] %vm974, %v857
  %987 = vst.msk [vmem:[%s3 + $0x30] sm:$0xf] %vm974, %v858
  %988 = vst.msk [vmem:[%s3 + $0x34] sm:$0xf] %vm974, %v859
  %989 = vst.msk [vmem:[%s3 + $0x38] sm:$0xf] %vm974, %v860
  %990 = vst.msk [vmem:[%s3 + $0x3c] sm:$0xf] %vm974, %v861
  %991 = vst.msk [vmem:[%s3 + $0x40] sm:$0xf] %vm974, %v862
  %992 = vst.msk [vmem:[%s3 + $0x44] sm:$0xf] %vm974, %v863
  %993 = vst.msk [vmem:[%s3 + $0x48] sm:$0xf] %vm974, %v864
  %994 = vst.msk [vmem:[%s3 + $0x4c] sm:$0xf] %vm974, %v865
  %995 = vst.msk [vmem:[%s3 + $0x50] sm:$0xf] %vm974, %v866
  %996 = vst.msk [vmem:[%s3 + $0x54] sm:$0xf] %vm974, %v867
  %997 = vst.msk [vmem:[%s3 + $0x58] sm:$0xf] %vm974, %v868
  %998 = vst.msk [vmem:[%s3 + $0x5c] sm:$0xf] %vm974, %v869
  %999 = vst.msk [vmem:[%s3 + $0x60] sm:$0xf] %vm974, %v870
  %1000 = vst.msk [vmem:[%s3 + $0x64] sm:$0xf] %vm974, %v871
  %1001 = vst.msk [vmem:[%s3 + $0x68] sm:$0xf] %vm974, %v872
  %1002 = vst.msk [vmem:[%s3 + $0x6c] sm:$0xf] %vm974, %v873
  %1003 = vst.msk [vmem:[%s3 + $0x70] sm:$0xf] %vm974, %v874
  %1004 = vst.msk [vmem:[%s3 + $0x74] sm:$0xf] %vm974, %v875
  %1005 = vst.msk [vmem:[%s3 + $0x78] sm:$0xf] %vm974, %v876
  %1006 = vst.msk [vmem:[%s3 + $0x7c] sm:$0xf] %vm974, %v877
  %1007 = vst.msk [vmem:[%s3 + $0x80] sm:$0xf] %vm974, %v878
  %1008 = vst.msk [vmem:[%s3 + $0x84] sm:$0xf] %vm974, %v879
  %1009 = vst.msk [vmem:[%s3 + $0x88] sm:$0xf] %vm974, %v880
  %1010 = vst.msk [vmem:[%s3 + $0x8c] sm:$0xf] %vm974, %v881
  %1011 = vst.msk [vmem:[%s3 + $0x90] sm:$0xf] %vm974, %v882
  %1012 = vst.msk [vmem:[%s3 + $0x94] sm:$0xf] %vm974, %v883
  %1013 = vst.msk [vmem:[%s3 + $0x98] sm:$0xf] %vm974, %v884
  %1014 = vst.msk [vmem:[%s3 + $0x9c] sm:$0xf] %vm974, %v885
  %1015 = vst.msk [vmem:[%s3 + $0xa0] sm:$0xf] %vm974, %v886
  %1016 = vst.msk [vmem:[%s3 + $0xa4] sm:$0xf] %vm974, %v887
  %1017 = vst.msk [vmem:[%s3 + $0xa8] sm:$0xf] %vm974, %v888
  %1018 = vst.msk [vmem:[%s3 + $0xac] sm:$0xf] %vm974, %v889
  %1019 = vst.msk [vmem:[%s3 + $0xb0] sm:$0xf] %vm974, %v890
  %1020 = vst.msk [vmem:[%s3 + $0xb4] sm:$0xf] %vm974, %v891
  %1021 = vst.msk [vmem:[%s3 + $0xb8] sm:$0xf] %vm974, %v892
  %1022 = vst.msk [vmem:[%s3 + $0xbc] sm:$0xf] %vm974, %v893
  %1023 = vst.msk [vmem:[%s3 + $0xc0] sm:$0xf] %vm974, %v894
  %1024 = vst.msk [vmem:[%s3 + $0xc4] sm:$0xf] %vm974, %v895
  %1025 = vst.msk [vmem:[%s3 + $0xc8] sm:$0xf] %vm974, %v896
  %1026 = vst.msk [vmem:[%s3 + $0xcc] sm:$0xf] %vm974, %v897
  %1027 = vst.msk [vmem:[%s3 + $0xd0] sm:$0xf] %vm974, %v898
  %1028 = vst.msk [vmem:[%s3 + $0xd4] sm:$0xf] %vm974, %v899
  %1029 = vst.msk [vmem:[%s3 + $0xd8] sm:$0xf] %vm974, %v900
  %1030 = vst.msk [vmem:[%s3 + $0xdc] sm:$0xf] %vm974, %v901
  %1031 = vst.msk [vmem:[%s3 + $0xe0] sm:$0xf] %vm974, %v902
  %1032 = vst.msk [vmem:[%s3 + $0xe4] sm:$0xf] %vm974, %v903
  %1033 = vst.msk [vmem:[%s3 + $0xe8] sm:$0xf] %vm974, %v904
  %1034 = vst.msk [vmem:[%s3 + $0xec] sm:$0xf] %vm974, %v905
  %1035 = vst.msk [vmem:[%s3 + $0xf0] sm:$0xf] %vm974, %v906
  %1036 = vst.msk [vmem:[%s3 + $0xf4] sm:$0xf] %vm974, %v907
  %1037 = vst.msk [vmem:[%s3 + $0xf8] sm:$0xf] %vm974, %v908
  %1038 = vst.msk [vmem:[%s3 + $0xfc] sm:$0xf] %vm974, %v909
  // Predicated region
  $region14: #{tpu_custom_call.1} parent=0 // pred_check
    _
  $region15: #{tpu_custom_call.1} parent=0 // pred_check_branch
    %1040 = sbr.rel (0) target = $region17
  $region16: #{tpu_custom_call.1} parent=0 // pred_region
    _
  $region17: #{tpu_custom_call.1} parent=0 // pred_fallthru
    _
  // Predicated region
  $region18: #{tpu_custom_call.1} parent=0 // pred_check
    _
  $region19: #{tpu_custom_call.1} parent=0 // pred_check_branch
    %1042 = sbr.rel (0) target = $region21
  $region20: #{tpu_custom_call.1} parent=0 // pred_region
    _
  $region21: #{tpu_custom_call.1} parent=0 // pred_fallthru
    _

</llo_original>
